<compile_context>
chip_gen: v7x
topology: tpu7x:2x2x1
jax: 0.10.0
libtpu: 0.0.40
codegen_flags: <defaults>
</compile_context>

<pallas_src>
import functools
import math

import jax
import jax.numpy as jnp
from jax.experimental import pallas as pl
from jax.experimental.pallas import tpu as pltpu


NEG_SLOPE = 0.1
_VMEM_BUDGET = 30 * 2**20            # working-set target (headroom on v7x 64 MiB)
_RESIDENT_WEIGHT_LIMIT = 16 * 2**20  # switch to layer-streaming above this


def _leaky(h):
    return jnp.maximum(h, NEG_SLOPE * h)


# ---------------------------------------------------------------------------
# Kernel A: fused (all weights VMEM-resident, single "parallel" batch grid).
# ---------------------------------------------------------------------------
def _fused_kernel(x_ref, w0_ref, b0_ref, wh_ref, bh_ref, wo_ref, bo_ref,
                  o_ref, *, num_layers):
    """One batch tile, full MLP.

    x_ref : (TB, C*S)  bf16   batch tile (double-buffered across the grid)
    w0_ref: (C*S, H)   bf16   resident
    b0_ref: (1, H)     f32    resident
    wh_ref: (L, H, H)  bf16   resident hidden-weight stack
    bh_ref: (L, 1, H)  f32    resident
    wo_ref: (1, H)     bf16   resident row vector
    bo_ref: (1, 1)     f32    SMEM scalar
    o_ref : (TB, 1)    f32
    """
    # Input linear + LeakyReLU(0.1).  (Dropout == identity in eval mode.)
    h = jnp.dot(x_ref[...], w0_ref[...],
                preferred_element_type=jnp.float32) + b0_ref[...]
    h = _leaky(h)

    # Hidden layers: static trip count -> fully unrolled, static ref indices.
    for l in range(num_layers):
        h = jnp.dot(h.astype(wh_ref.dtype), wh_ref[l],
                    preferred_element_type=jnp.float32) + bh_ref[l]
        h = _leaky(h)

    # Output linear H -> 1: VPU multiply + XLU lane reduce (MXU stays free).
    wo_row = wo_ref[...].astype(jnp.float32)                       # (1, H)
    o_ref[...] = (jnp.sum(h * wo_row, axis=-1, keepdims=True) + bo_ref[0, 0])


# ---------------------------------------------------------------------------
# Kernel B: layer-streaming fallback (one hidden layer per grid step).
# ---------------------------------------------------------------------------
def _streamed_kernel(x_ref, w0_ref, b0_ref, wh_ref, bh_ref, wo_ref, bo_ref,
                     o_ref, h_ref):
    """One (batch_tile, hidden_layer) grid step.

    wh_ref: (1, H, H) bf16 streamed hidden layer k; h_ref: (TB, H) f32 scratch
    persisting across the layer axis.
    """
    k = pl.program_id(1)

    @pl.when(k == 0)
    def _init():
        h0 = jnp.dot(x_ref[...], w0_ref[...],
                     preferred_element_type=jnp.float32) + b0_ref[...]
        h_ref[...] = _leaky(h0)

    h = jnp.dot(h_ref[...].astype(wh_ref.dtype), wh_ref[0],
                preferred_element_type=jnp.float32) + bh_ref[0]
    h_ref[...] = _leaky(h)

    @pl.when(k == pl.num_programs(1) - 1)
    def _finalize():
        wo_row = wo_ref[...].astype(jnp.float32)                   # (1, H)
        o_ref[...] = (jnp.sum(h_ref[...] * wo_row, axis=-1, keepdims=True)
                      + bo_ref[0, 0])


# ---------------------------------------------------------------------------
# Wrappers.
# ---------------------------------------------------------------------------
def _pick_tile_b(B, per_row_bytes, resident_bytes):
    """Largest batch tile whose VMEM working set fits the budget."""
    if resident_bytes + B * per_row_bytes <= _VMEM_BUDGET:
        return B                                    # single (full) tile
    for cand in (2048, 1024, 512, 256, 128, 64, 32, 16, 8):
        if cand < B and resident_bytes + cand * per_row_bytes <= _VMEM_BUDGET:
            return cand
    return 8


def _run_fused(x_bf, w0_bf, b0_f, wh_bf, bh_f, wo_row, bo_s, num_layers):
    B, d_in = x_bf.shape
    H = w0_bf.shape[1]
    L = wh_bf.shape[0]

    resident = ((d_in * H + L * H * H + H) * 2          # w0, wh, wo (bf16)
                + (H + L * H) * 4 + 4)                  # b0, bh (f32), bo
    per_row = 2 * d_in * 2 + 6 * H * 4 + 2 * 4          # x dbl-buf + h temps + out
    tile_b = _pick_tile_b(B, per_row, resident)

    vmem_needed = resident + tile_b * per_row
    assert vmem_needed <= 44 * 2**20, (
        f"VMEM footprint {vmem_needed / 2**20:.1f} MiB too large; shrink tile/H")
    vmem_limit = int(min(max(2 * vmem_needed, 16 * 2**20), 48 * 2**20))

    flops = 2 * B * (d_in * H + num_layers * H * H + H)
    bytes_accessed = int(x_bf.size * 2 + w0_bf.size * 2 + wh_bf.size * 2
                         + wo_row.size * 2 + b0_f.size * 4 + bh_f.size * 4
                         + B * 4)

    grid_spec = pltpu.PrefetchScalarGridSpec(
        num_scalar_prefetch=0,
        grid=(pl.cdiv(B, tile_b),),
        in_specs=[
            pl.BlockSpec((tile_b, d_in), lambda i: (i, 0)),      # x (batch tile)
            pl.BlockSpec((d_in, H), lambda i: (0, 0)),           # w0 (resident)
            pl.BlockSpec((1, H), lambda i: (0, 0)),              # b0 (resident)
            pl.BlockSpec((L, H, H), lambda i: (0, 0, 0)),        # wh stack (resident)
            pl.BlockSpec((L, 1, H), lambda i: (0, 0, 0)),        # bh stack (resident)
            pl.BlockSpec((1, H), lambda i: (0, 0)),              # wo row (resident)
            pl.BlockSpec(memory_space=pltpu.MemorySpace.SMEM),   # bo scalar
        ],
        out_specs=pl.BlockSpec((tile_b, 1), lambda i: (i, 0)),
    )

    return pl.pallas_call(
        functools.partial(_fused_kernel, num_layers=num_layers),
        out_shape=jax.ShapeDtypeStruct((B, 1), jnp.float32),
        grid_spec=grid_spec,
        compiler_params=pltpu.CompilerParams(
            dimension_semantics=("parallel",),
            vmem_limit_bytes=vmem_limit),
        cost_estimate=pl.CostEstimate(
            flops=flops, transcendentals=0, bytes_accessed=bytes_accessed),
    )(x_bf, w0_bf, b0_f, wh_bf, bh_f, wo_row, bo_s)


def _run_streamed(x_bf, w0_bf, b0_f, wh_bf, bh_f, wo_row, bo_s):
    B, d_in = x_bf.shape
    H = w0_bf.shape[1]
    num_layers = wh_bf.shape[0]

    resident = ((d_in * H + H) * 2 + H * 4              # w0, wo, b0
                + 2 * (H * H * 2 + H * 4) + 4)          # dbl-buffered wh/bh blocks
    per_row = 2 * d_in * 2 + H * 4 + 3 * H * 4 + 2 * 4  # x dbl-buf + h scratch/temps
    tile_b = _pick_tile_b(B, per_row, resident)

    vmem_needed = resident + tile_b * per_row
    assert vmem_needed <= 44 * 2**20, (
        f"VMEM footprint {vmem_needed / 2**20:.1f} MiB too large; shrink tile/H")
    vmem_limit = int(min(max(2 * vmem_needed, 16 * 2**20), 48 * 2**20))

    n_tiles = pl.cdiv(B, tile_b)
    flops = 2 * B * (d_in * H + num_layers * H * H + H)
    bytes_accessed = int(x_bf.size * 2 + w0_bf.size * 2
                         + n_tiles * (wh_bf.size * 2 + bh_f.size * 4)
                         + wo_row.size * 2 + b0_f.size * 4 + B * 4)

    grid_spec = pltpu.PrefetchScalarGridSpec(
        num_scalar_prefetch=0,
        grid=(n_tiles, num_layers),
        in_specs=[
            pl.BlockSpec((tile_b, d_in), lambda i, k: (i, 0)),      # x (batch tile)
            pl.BlockSpec((d_in, H), lambda i, k: (0, 0)),           # w0 (resident)
            pl.BlockSpec((1, H), lambda i, k: (0, 0)),              # b0 (resident)
            pl.BlockSpec((1, H, H), lambda i, k: (k, 0, 0)),        # wh (streamed)
            pl.BlockSpec((1, 1, H), lambda i, k: (k, 0, 0)),        # bh (streamed)
            pl.BlockSpec((1, H), lambda i, k: (0, 0)),              # wo row (resident)
            pl.BlockSpec(memory_space=pltpu.MemorySpace.SMEM),      # bo scalar
        ],
        out_specs=pl.BlockSpec((tile_b, 1), lambda i, k: (i, 0)),
        scratch_shapes=[pltpu.VMEM((tile_b, H), jnp.float32)],
    )

    return pl.pallas_call(
        _streamed_kernel,
        out_shape=jax.ShapeDtypeStruct((B, 1), jnp.float32),
        grid_spec=grid_spec,
        compiler_params=pltpu.CompilerParams(
            dimension_semantics=("parallel", "arbitrary"),
            vmem_limit_bytes=vmem_limit),
        cost_estimate=pl.CostEstimate(
            flops=flops, transcendentals=0, bytes_accessed=bytes_accessed),
    )(x_bf, w0_bf, b0_f, wh_bf, bh_f, wo_row, bo_s)


def ff_discriminator(data, params, *, channels, seq_len, force_path=None):
    """Mirrors FFDiscriminator.forward (eval semantics)."""
    if data.ndim == 4:
        # (B, C, 1, S) -> squeeze(2) -> (B, C, S) -> permute(0,2,1) -> (B, S, C)
        data = jnp.transpose(jnp.squeeze(data, axis=2), (0, 2, 1))
    x = data.reshape(-1, seq_len * channels).astype(jnp.float32)

    w0, b0, wh, bh, wo, bo = params
    num_layers = wh.shape[0]
    H = w0.shape[1]

    # bf16 operands for the MXU (f32 accumulation); biases stay f32.
    x_bf = x.astype(jnp.bfloat16)
    w0_bf = w0.astype(jnp.bfloat16)
    b0_f = b0.reshape(1, H).astype(jnp.float32)
    wo_row = wo.reshape(1, H).astype(jnp.bfloat16)
    bo_s = bo.reshape(1, 1).astype(jnp.float32)

    if num_layers == 0:
        # Dummy (unused) hidden stack so the fused kernel's specs stay uniform.
        wh_bf = jnp.zeros((1, H, H), jnp.bfloat16)
        bh_f = jnp.zeros((1, 1, H), jnp.float32)
    else:
        wh_bf = wh.astype(jnp.bfloat16)
        bh_f = bh.reshape(num_layers, 1, H).astype(jnp.float32)

    resident_weight_bytes = (wh_bf.size + w0_bf.size) * 2
    if force_path is None:
        path = "fused" if resident_weight_bytes <= _RESIDENT_WEIGHT_LIMIT else "stream"
    else:
        path = force_path

    if path == "fused":
        return _run_fused(x_bf, w0_bf, b0_f, wh_bf, bh_f, wo_row, bo_s, num_layers)
    assert num_layers >= 1, "layer-streaming path requires num_layers >= 1"
    return _run_streamed(x_bf, w0_bf, b0_f, wh_bf, bh_f, wo_row, bo_s)


# ---------------------------------------------------------------------------
# Params + references.
# ---------------------------------------------------------------------------
def init_params(key, channels, seq_len, hidden_dim, num_layers):
    """Deterministic PyTorch-style Linear init: U(-1/sqrt(fan_in), +1/sqrt(fan_in))."""
    d_in = channels * seq_len
    n_linear = num_layers + 2
    keys = jax.random.split(key, 2 * n_linear)

    def linear(kw, kb, fan_in, fan_out):
        bound = 1.0 / math.sqrt(fan_in)
        w = jax.random.uniform(kw, (fan_in, fan_out), jnp.float32, -bound, bound)
        b = jax.random.uniform(kb, (1, fan_out), jnp.float32, -bound, bound)
        return w, b

    w0, b0 = linear(keys[0], keys[1], d_in, hidden_dim)
    whs, bhs = [], []
    for l in range(num_layers):
        w, b = linear(keys[2 + 2 * l], keys[3 + 2 * l], hidden_dim, hidden_dim)
        whs.append(w)
        bhs.append(b)
    wh = jnp.stack(whs) if num_layers else jnp.zeros((0, hidden_dim, hidden_dim))
    bh = (jnp.stack(bhs).reshape(num_layers, 1, hidden_dim)
          if num_layers else jnp.zeros((0, 1, hidden_dim)))
    wo, bo = linear(keys[-2], keys[-1], hidden_dim, 1)
    return w0, b0, wh, bh, wo, bo


def ff_discriminator_ref_f32(data, params, *, channels, seq_len):
    """Pure-f32 JAX reference (module semantics, eval mode)."""
    if data.ndim == 4:
        data = jnp.transpose(jnp.squeeze(data, axis=2), (0, 2, 1))
    x = data.reshape(-1, seq_len * channels).astype(jnp.float32)
    w0, b0, wh, bh, wo, bo = params
    h = x @ w0 + b0
    h = jnp.maximum(h, NEG_SLOPE * h)
    for l in range(wh.shape[0]):
        h = h @ wh[l] + bh[l]
        h = jnp.maximum(h, NEG_SLOPE * h)
    return h @ wo + bo


def ff_discriminator_ref_bf16(data, params, *, channels, seq_len):
    """Reference mimicking the kernels' bf16-operand / f32-accumulate math."""
    if data.ndim == 4:
        data = jnp.transpose(jnp.squeeze(data, axis=2), (0, 2, 1))
    x = data.reshape(-1, seq_len * channels).astype(jnp.float32)
    w0, b0, wh, bh, wo, bo = params
    bf = lambda a: a.astype(jnp.bfloat16)
    h = jnp.dot(bf(x), bf(w0), preferred_element_type=jnp.float32) + b0
    h = jnp.maximum(h, NEG_SLOPE * h)
    for l in range(wh.shape[0]):
        h = jnp.dot(bf(h), bf(wh[l]), preferred_element_type=jnp.float32) + bh[l]
        h = jnp.maximum(h, NEG_SLOPE * h)
    wo_row = bf(wo.reshape(1, -1)).astype(jnp.float32)
    return jnp.sum(h * wo_row, axis=-1, keepdims=True) + bo.reshape(1, 1)


if __name__ == "__main__":
    # Small shapes consistent with the module.
    batch, channels, seq_len = 2, 4, 8
    hidden_dim, num_layers = 32, 4

    key = jax.random.PRNGKey(0)
    k_params, k_data = jax.random.split(key)

    params = init_params(k_params, channels, seq_len, hidden_dim, num_layers)

    # 4-D input (B, C, 1, S) to exercise the squeeze/permute path.
    x = jax.random.normal(k_data, (batch, channels, 1, seq_len), dtype=jnp.float32)

    out_fused = jax.block_until_ready(
        ff_discriminator(x, params, channels=channels, seq_len=seq_len))
    out_stream = jax.block_until_ready(
        ff_discriminator(x, params, channels=channels, seq_len=seq_len,
                         force_path="stream"))

    ref_bf16 = ff_discriminator_ref_bf16(x, params, channels=channels, seq_len=seq_len)
    ref_f32 = ff_discriminator_ref_f32(x, params, channels=channels, seq_len=seq_len)

    for out in (out_fused, out_stream):
        assert out.shape == (batch, 1), out.shape
        # Tight check against the bf16-operand reference (same numerics as kernels).
        assert jnp.allclose(out, ref_bf16, atol=2e-3, rtol=2e-3), (out, ref_bf16)
        # Looser sanity check against the pure-f32 module semantics.
        assert jnp.allclose(out, ref_f32, atol=5e-2, rtol=5e-2), (out, ref_f32)

    print("KERNEL_OK")
</pallas_src>

<mosaic_0001>
module attributes {stable_mosaic.version = 11 : i64} {
  func.func @_fused_kernel(%arg0: i32, %arg1: memref<2x32xbf16, #tpu.memory_space<vmem>>, %arg2: memref<32x32xbf16, #tpu.memory_space<vmem>>, %arg3: memref<1x32xf32, #tpu.memory_space<vmem>>, %arg4: memref<4x32x32xbf16, #tpu.memory_space<vmem>>, %arg5: memref<4x1x32xf32, #tpu.memory_space<vmem>>, %arg6: memref<1x32xbf16, #tpu.memory_space<vmem>>, %arg7: memref<1x1xf32, #tpu.memory_space<smem>>, %arg8: memref<2x1xf32, #tpu.memory_space<vmem>>) attributes {dimension_semantics = [#tpu.dimension_semantics<parallel>], iteration_bounds = array<i64: 1>, scalar_prefetch = 0 : i64, scratch_operands = 0 : i64, tpu.core_type = #tpu.core_type<tc>, window_params = [{transform_indices = @transform_0, window_bounds = array<i64: 2, 32>}, {pipeline_mode = #tpu.pipeline_mode<synchronous>, transform_indices = @transform_1, window_bounds = array<i64: 32, 32>}, {pipeline_mode = #tpu.pipeline_mode<synchronous>, transform_indices = @transform_2, window_bounds = array<i64: 1, 32>}, {pipeline_mode = #tpu.pipeline_mode<synchronous>, transform_indices = @transform_3, window_bounds = array<i64: 4, 32, 32>}, {pipeline_mode = #tpu.pipeline_mode<synchronous>, transform_indices = @transform_4, window_bounds = array<i64: 4, 1, 32>}, {pipeline_mode = #tpu.pipeline_mode<synchronous>, transform_indices = @transform_5, window_bounds = array<i64: 1, 32>}, {transform_indices = @transform_6, window_bounds = array<i64: 1, 1>}, {transform_indices = @transform_7, window_bounds = array<i64: 2, 1>}]} {
    %c0 = arith.constant 0 : index
    %c0_0 = arith.constant 0 : index
    %0 = vector.load %arg1[%c0, %c0_0] : memref<2x32xbf16, #tpu.memory_space<vmem>>, vector<2x32xbf16>
    %c0_1 = arith.constant 0 : index
    %c0_2 = arith.constant 0 : index
    %1 = vector.load %arg2[%c0_1, %c0_2] : memref<32x32xbf16, #tpu.memory_space<vmem>>, vector<32x32xbf16>
    %cst = arith.constant dense<0.000000e+00> : vector<2x32xf32>
    %2 = tpu.matmul %0, %1, %cst {dimension_numbers = #tpu.dot_dimension_numbers<[1], [0], [0], [1], [0, 0, 1, 1], [], []>} : vector<2x32xbf16>, vector<32x32xbf16>, vector<2x32xf32> -> vector<2x32xf32>
    %c0_3 = arith.constant 0 : index
    %c0_4 = arith.constant 0 : index
    %3 = vector.load %arg3[%c0_3, %c0_4] : memref<1x32xf32, #tpu.memory_space<vmem>>, vector<1x32xf32>
    %4 = vector.broadcast %3 : vector<1x32xf32> to vector<2x32xf32>
    %5 = arith.addf %2, %4 : vector<2x32xf32>
    %cst_5 = arith.constant 1.000000e-01 : f32
    %6 = vector.broadcast %cst_5 : f32 to vector<2x32xf32>
    %7 = arith.mulf %6, %5 : vector<2x32xf32>
    %8 = arith.maximumf %5, %7 : vector<2x32xf32>
    %9 = arith.truncf %8 : vector<2x32xf32> to vector<2x32xbf16>
    %c0_6 = arith.constant 0 : index
    %c0_7 = arith.constant 0 : index
    %c0_8 = arith.constant 0 : index
    %10 = vector.load %arg4[%c0_6, %c0_7, %c0_8] : memref<4x32x32xbf16, #tpu.memory_space<vmem>>, vector<1x32x32xbf16>
    %11 = vector.shape_cast %10 : vector<1x32x32xbf16> to vector<32x32xbf16>
    %cst_9 = arith.constant dense<0.000000e+00> : vector<2x32xf32>
    %12 = tpu.matmul %9, %11, %cst_9 {dimension_numbers = #tpu.dot_dimension_numbers<[1], [0], [0], [1], [0, 0, 1, 1], [], []>} : vector<2x32xbf16>, vector<32x32xbf16>, vector<2x32xf32> -> vector<2x32xf32>
    %c0_10 = arith.constant 0 : index
    %c0_11 = arith.constant 0 : index
    %c0_12 = arith.constant 0 : index
    %13 = vector.load %arg5[%c0_10, %c0_11, %c0_12] : memref<4x1x32xf32, #tpu.memory_space<vmem>>, vector<1x1x32xf32>
    %14 = vector.shape_cast %13 : vector<1x1x32xf32> to vector<1x32xf32>
    %15 = vector.broadcast %14 : vector<1x32xf32> to vector<2x32xf32>
    %16 = arith.addf %12, %15 : vector<2x32xf32>
    %cst_13 = arith.constant 1.000000e-01 : f32
    %17 = vector.broadcast %cst_13 : f32 to vector<2x32xf32>
    %18 = arith.mulf %17, %16 : vector<2x32xf32>
    %19 = arith.maximumf %16, %18 : vector<2x32xf32>
    %20 = arith.truncf %19 : vector<2x32xf32> to vector<2x32xbf16>
    %c1 = arith.constant 1 : index
    %c0_14 = arith.constant 0 : index
    %c0_15 = arith.constant 0 : index
    %21 = vector.load %arg4[%c1, %c0_14, %c0_15] : memref<4x32x32xbf16, #tpu.memory_space<vmem>>, vector<1x32x32xbf16>
    %22 = vector.shape_cast %21 : vector<1x32x32xbf16> to vector<32x32xbf16>
    %cst_16 = arith.constant dense<0.000000e+00> : vector<2x32xf32>
    %23 = tpu.matmul %20, %22, %cst_16 {dimension_numbers = #tpu.dot_dimension_numbers<[1], [0], [0], [1], [0, 0, 1, 1], [], []>} : vector<2x32xbf16>, vector<32x32xbf16>, vector<2x32xf32> -> vector<2x32xf32>
    %c1_17 = arith.constant 1 : index
    %c0_18 = arith.constant 0 : index
    %c0_19 = arith.constant 0 : index
    %24 = vector.load %arg5[%c1_17, %c0_18, %c0_19] : memref<4x1x32xf32, #tpu.memory_space<vmem>>, vector<1x1x32xf32>
    %25 = vector.shape_cast %24 : vector<1x1x32xf32> to vector<1x32xf32>
    %26 = vector.broadcast %25 : vector<1x32xf32> to vector<2x32xf32>
    %27 = arith.addf %23, %26 : vector<2x32xf32>
    %cst_20 = arith.constant 1.000000e-01 : f32
    %28 = vector.broadcast %cst_20 : f32 to vector<2x32xf32>
    %29 = arith.mulf %28, %27 : vector<2x32xf32>
    %30 = arith.maximumf %27, %29 : vector<2x32xf32>
    %31 = arith.truncf %30 : vector<2x32xf32> to vector<2x32xbf16>
    %c2 = arith.constant 2 : index
    %c0_21 = arith.constant 0 : index
    %c0_22 = arith.constant 0 : index
    %32 = vector.load %arg4[%c2, %c0_21, %c0_22] : memref<4x32x32xbf16, #tpu.memory_space<vmem>>, vector<1x32x32xbf16>
    %33 = vector.shape_cast %32 : vector<1x32x32xbf16> to vector<32x32xbf16>
    %cst_23 = arith.constant dense<0.000000e+00> : vector<2x32xf32>
    %34 = tpu.matmul %31, %33, %cst_23 {dimension_numbers = #tpu.dot_dimension_numbers<[1], [0], [0], [1], [0, 0, 1, 1], [], []>} : vector<2x32xbf16>, vector<32x32xbf16>, vector<2x32xf32> -> vector<2x32xf32>
    %c2_24 = arith.constant 2 : index
    %c0_25 = arith.constant 0 : index
    %c0_26 = arith.constant 0 : index
    %35 = vector.load %arg5[%c2_24, %c0_25, %c0_26] : memref<4x1x32xf32, #tpu.memory_space<vmem>>, vector<1x1x32xf32>
    %36 = vector.shape_cast %35 : vector<1x1x32xf32> to vector<1x32xf32>
    %37 = vector.broadcast %36 : vector<1x32xf32> to vector<2x32xf32>
    %38 = arith.addf %34, %37 : vector<2x32xf32>
    %cst_27 = arith.constant 1.000000e-01 : f32
    %39 = vector.broadcast %cst_27 : f32 to vector<2x32xf32>
    %40 = arith.mulf %39, %38 : vector<2x32xf32>
    %41 = arith.maximumf %38, %40 : vector<2x32xf32>
    %42 = arith.truncf %41 : vector<2x32xf32> to vector<2x32xbf16>
    %c3 = arith.constant 3 : index
    %c0_28 = arith.constant 0 : index
    %c0_29 = arith.constant 0 : index
    %43 = vector.load %arg4[%c3, %c0_28, %c0_29] : memref<4x32x32xbf16, #tpu.memory_space<vmem>>, vector<1x32x32xbf16>
    %44 = vector.shape_cast %43 : vector<1x32x32xbf16> to vector<32x32xbf16>
    %cst_30 = arith.constant dense<0.000000e+00> : vector<2x32xf32>
    %45 = tpu.matmul %42, %44, %cst_30 {dimension_numbers = #tpu.dot_dimension_numbers<[1], [0], [0], [1], [0, 0, 1, 1], [], []>} : vector<2x32xbf16>, vector<32x32xbf16>, vector<2x32xf32> -> vector<2x32xf32>
    %c3_31 = arith.constant 3 : index
    %c0_32 = arith.constant 0 : index
    %c0_33 = arith.constant 0 : index
    %46 = vector.load %arg5[%c3_31, %c0_32, %c0_33] : memref<4x1x32xf32, #tpu.memory_space<vmem>>, vector<1x1x32xf32>
    %47 = vector.shape_cast %46 : vector<1x1x32xf32> to vector<1x32xf32>
    %48 = vector.broadcast %47 : vector<1x32xf32> to vector<2x32xf32>
    %49 = arith.addf %45, %48 : vector<2x32xf32>
    %cst_34 = arith.constant 1.000000e-01 : f32
    %50 = vector.broadcast %cst_34 : f32 to vector<2x32xf32>
    %51 = arith.mulf %50, %49 : vector<2x32xf32>
    %52 = arith.maximumf %49, %51 : vector<2x32xf32>
    %c0_35 = arith.constant 0 : index
    %c0_36 = arith.constant 0 : index
    %53 = vector.load %arg6[%c0_35, %c0_36] : memref<1x32xbf16, #tpu.memory_space<vmem>>, vector<1x32xbf16>
    %54 = arith.extf %53 : vector<1x32xbf16> to vector<1x32xf32>
    %55 = vector.broadcast %54 : vector<1x32xf32> to vector<2x32xf32>
    %56 = arith.mulf %52, %55 : vector<2x32xf32>
    %cst_37 = arith.constant dense<0.000000e+00> : vector<2xf32>
    %57 = vector.multi_reduction <add>, %56, %cst_37 [1] : vector<2x32xf32> to vector<2xf32>
    %58 = vector.shape_cast %57 : vector<2xf32> to vector<2x1xf32>
    %c0_38 = arith.constant 0 : index
    %c0_39 = arith.constant 0 : index
    %59 = memref.load %arg7[%c0_38, %c0_39] : memref<1x1xf32, #tpu.memory_space<smem>>
    %60 = vector.broadcast %59 : f32 to vector<2x1xf32>
    %61 = arith.addf %58, %60 : vector<2x1xf32>
    %c0_40 = arith.constant 0 : index
    %c0_41 = arith.constant 0 : index
    %62 = vector.load %arg8[%c0_40, %c0_41] : memref<2x1xf32, #tpu.memory_space<vmem>>, vector<2x1xf32>
    tpu.vector_store %arg8[%c0_40, %c0_41], %61 {strides = array<i32>} : memref<2x1xf32, #tpu.memory_space<vmem>>, vector<2x1xf32>,
    return
  }
  func.func @transform_0(%arg0: i32) -> (i32, i32) {
    %c0_i32 = arith.constant 0 : i32
    %c0_i32_0 = arith.constant 0 : i32
    return %arg0, %c0_i32 : i32, i32
  }
  func.func @transform_1(%arg0: i32) -> (i32, i32) {
    %c0_i32 = arith.constant 0 : i32
    %c0_i32_0 = arith.constant 0 : i32
    %c0_i32_1 = arith.constant 0 : i32
    return %c0_i32, %c0_i32_0 : i32, i32
  }
  func.func @transform_2(%arg0: i32) -> (i32, i32) {
    %c0_i32 = arith.constant 0 : i32
    %c0_i32_0 = arith.constant 0 : i32
    %c0_i32_1 = arith.constant 0 : i32
    return %c0_i32, %c0_i32_0 : i32, i32
  }
  func.func @transform_3(%arg0: i32) -> (i32, i32, i32) {
    %c0_i32 = arith.constant 0 : i32
    %c0_i32_0 = arith.constant 0 : i32
    %c0_i32_1 = arith.constant 0 : i32
    %c0_i32_2 = arith.constant 0 : i32
    return %c0_i32, %c0_i32_0, %c0_i32_1 : i32, i32, i32
  }
  func.func @transform_4(%arg0: i32) -> (i32, i32, i32) {
    %c0_i32 = arith.constant 0 : i32
    %c0_i32_0 = arith.constant 0 : i32
    %c0_i32_1 = arith.constant 0 : i32
    %c0_i32_2 = arith.constant 0 : i32
    return %c0_i32, %c0_i32_0, %c0_i32_1 : i32, i32, i32
  }
  func.func @transform_5(%arg0: i32) -> (i32, i32) {
    %c0_i32 = arith.constant 0 : i32
    %c0_i32_0 = arith.constant 0 : i32
    %c0_i32_1 = arith.constant 0 : i32
    return %c0_i32, %c0_i32_0 : i32, i32
  }
  func.func @transform_6(%arg0: i32) -> (i32, i32) {
    %c0_i32 = arith.constant 0 : i32
    %c0_i32_0 = arith.constant 0 : i32
    %c0_i32_1 = arith.constant 0 : i32
    return %c0_i32, %c0_i32_0 : i32, i32
  }
  func.func @transform_7(%arg0: i32) -> (i32, i32) {
    %c0_i32 = arith.constant 0 : i32
    %c0_i32_0 = arith.constant 0 : i32
    return %arg0, %c0_i32 : i32, i32
  }
}

</mosaic_0001>

<llo_original>
// kernel: tpu_custom_call.1
$region0: #{tpu_custom_call.1}
  #allocation0 [shape = 'u32[]', space=smem, size = 0x4, offset = 0x4, fixed_abs, tag = 'smem constant byte address 0x4 - core index']
  #allocation1 [shape = 'u32[144,128]{1,0:T(1,128)}', space=vmem, size = 0x12000, scoped, tag = 'internal scratch']
  #allocation2 [shape = 'f32[1,1]{1,0:T(1,128)S(6)}', space=smem, size = 0x200, scoped, tag = 'scoped memory for tpu_custom_call.1']
  %s0 = inlined_call_operand.vmem [shape: bf16[2,32], index: 0, kind: input, shape index: {}]
  %s1 = inlined_call_operand.hbm [shape: bf16[32,32], index: 1, kind: input, shape index: {}]
  %s2 = inlined_call_operand.vmem [shape: f32[1,32], index: 2, kind: input, shape index: {}]
  %s3 = inlined_call_operand.hbm [shape: bf16[4,32,32], index: 3, kind: input, shape index: {}]
  %s4 = inlined_call_operand.vmem [shape: f32[4,1,32], index: 4, kind: input, shape index: {}]
  %s5 = inlined_call_operand.vmem [shape: bf16[1,32], index: 5, kind: input, shape index: {}]
  %s6 = inlined_call_operand.<no memory space> [shape: f32[1,1], index: 6, kind: input, shape index: {}]
  %s7 = inlined_call_operand.vmem [shape: f32[2,1], index: 7, kind: output, shape index: {}]
  %s8 = sld [smem:[#allocation0]]
  $region46: #{tpu_custom_call.1} parent=0
    _
  %s10 = ssub.s32 1, %s8
  %s11 = scalar_select 0, %s10, %s8
  %12 = sst [smem:[#allocation2]] %s6
  $region1: #{tpu_custom_call.1} parent=0
    #allocation3 [shape = 'u8[8192]{0}', space=vmem, size = 0x2000, scoped, tag = 'input window, operand 1, single buffered']
    #allocation4 [shape = 's32[1]{0}', space=sflag, size = 0x4, scoped, tag = 'scoped memory for tpu_custom_call.1']
    #allocation5 [shape = 'u8[32768]{0}', space=vmem, size = 0x8000, scoped, tag = 'input window, operand 3, single buffered']
    #allocation6 [shape = 's32[1]{0}', space=sflag, size = 0x4, scoped, tag = 'scoped memory for tpu_custom_call.1']
    %13 = vsyncpa [#allocation4], 0
    %14 = vsyncpa [#allocation6], 0
    // Predicated region
    $region2: #{tpu_custom_call.1} parent=1 // pred_check
      _
    $region3: #{tpu_custom_call.1} parent=1 // pred_check_branch
      %16 = sbr.rel (0) target = $region5
    $region4: #{tpu_custom_call.1} parent=1 // pred_region
      _
    $region5: #{tpu_custom_call.1} parent=1 // pred_fallthru
      _
    // Predicated region
    $region6: #{tpu_custom_call.1} parent=1 // pred_check
      _
    $region7: #{tpu_custom_call.1} parent=1 // pred_check_branch
      %18 = sbr.rel (0) target = $region9
    $region8: #{tpu_custom_call.1} parent=1 // pred_region
      %s20 = ssub.s32 256, 256
      %21 = vsyncadd [#allocation4], %s20
      %s22 = sshll.u32 [#allocation3], 4
      %s23 = int_to_ptr.vmem [resolvable:$true] %s22
      %28 = dma.hbm_to_vmem [thread:$0]  %s1, 256, %s23, [#allocation4], 64, 64, 4
    $region9: #{tpu_custom_call.1} parent=1 // pred_fallthru
      _
    // Predicated region
    $region10: #{tpu_custom_call.1} parent=1 // pred_check
      _
    $region11: #{tpu_custom_call.1} parent=1 // pred_check_branch
      %30 = sbr.rel (0) target = $region13
    $region12: #{tpu_custom_call.1} parent=1 // pred_region
      _
    $region13: #{tpu_custom_call.1} parent=1 // pred_fallthru
      _
    // Predicated region
    $region14: #{tpu_custom_call.1} parent=1 // pred_check
      _
    $region15: #{tpu_custom_call.1} parent=1 // pred_check_branch
      %32 = sbr.rel (0) target = $region17
    $region16: #{tpu_custom_call.1} parent=1 // pred_region
      %s34 = ssub.s32 1024, 1024
      %35 = vsyncadd [#allocation6], %s34
      %s36 = sshll.u32 [#allocation5], 4
      %s37 = int_to_ptr.vmem [resolvable:$true] %s36
      %42 = dma.hbm_to_vmem [thread:$0]  %s3, 1024, %s37, [#allocation6], 64, 64, 4
    $region17: #{tpu_custom_call.1} parent=1 // pred_fallthru
      _
    // Predicated region
    $region18: #{tpu_custom_call.1} parent=1 // pred_check
      _
    $region19: #{tpu_custom_call.1} parent=1 // pred_check_branch
      %44 = sbr.rel (0) target = $region21
    $region20: #{tpu_custom_call.1} parent=1 // pred_region
      _
    $region21: #{tpu_custom_call.1} parent=1 // pred_fallthru
      _
    // Predicated region
    $region22: #{tpu_custom_call.1} parent=1 // pred_check
      _
    $region23: #{tpu_custom_call.1} parent=1 // pred_check_branch
      %46 = sbr.rel (0) target = $region25
    $region24: #{tpu_custom_call.1} parent=1 // pred_region
      _
    $region25: #{tpu_custom_call.1} parent=1 // pred_fallthru
      _
    // Predicated region
    $region26: #{tpu_custom_call.1} parent=1 // pred_check
      _
    $region27: #{tpu_custom_call.1} parent=1 // pred_check_branch
      %48 = sbr.rel (0) target = $region29
    $region28: #{tpu_custom_call.1} parent=1 // pred_region
      _
    $region29: #{tpu_custom_call.1} parent=1 // pred_fallthru
      _
    // Predicated region
    $region30: #{tpu_custom_call.1} parent=1 // pred_check
      _
    $region31: #{tpu_custom_call.1} parent=1 // pred_check_branch
      %50 = sbr.rel (0) target = $region33
    $region32: #{tpu_custom_call.1} parent=1 // pred_region
      %51 = dma.done [#allocation4], 256
    $region33: #{tpu_custom_call.1} parent=1 // pred_fallthru
      _
    // Predicated region
    $region34: #{tpu_custom_call.1} parent=1 // pred_check
      _
    $region35: #{tpu_custom_call.1} parent=1 // pred_check_branch
      %53 = sbr.rel (0) target = $region37
    $region36: #{tpu_custom_call.1} parent=1 // pred_region
      %54 = dma.done [#allocation6], 1024
    $region37: #{tpu_custom_call.1} parent=1 // pred_fallthru
      _
    %v56 = vld [vmem:[%s0] sm:$0x1]
    %v57 = vld [vmem:[#allocation3] sm:$0xf]
    %v58 = vld [vmem:[#allocation3 + $0x4] sm:$0xf]
    %v59 = vld [vmem:[#allocation3 + $0x8] sm:$0xf]
    %v60 = vld [vmem:[#allocation3 + $0xc] sm:$0xf]
    %v61 = vld [vmem:[%s2] sm:$0x1]
    %v63 = vlaneseq
    %v64 = vshrl.u32 %v63, 7
    %v65 = vsub.s32 0, %v64
    %v66 = vrot.slane %v61, %v65
    %v72 = vunpack.c.l.b16 %v57
    %v73 = vunpack.c.l.b16 %v58
    %v74 = vunpack.c.l.b16 %v59
    %v75 = vunpack.c.l.b16 %v60
    %v76 = vpack.c.b16 %v73, %v72
    %v77 = vpack.c.b16 %v75, %v74
    %vm80 = vcmask 261120
    %v82 = vsel %vm80, %v56, 0
    %84 = vmatprep.subr.bf16.mxu0 0
    %85 = vmatpush1.bf16.msra.mxu0 %v76
    %86 = vmatprep.subr.bf16.mxu0 0
    %87 = vmatpush1.bf16.msra.mxu0 %v77
    %88 = vmatprep.subr.bf16.mxu0 0
    %89 = vmatpush1.bf16.msra.mxu0 0
    %90 = vmatprep.subr.bf16.mxu0 0
    %91 = vmatpush1.bf16.msra.mxu0 0
    %92 = vmatprep.subr.bf16.mxu0 0
    %93 = vmatpush1.bf16.msra.mxu0 0
    %94 = vmatprep.subr.bf16.mxu0 0
    %95 = vmatpush1.bf16.msra.mxu0 0
    %96 = vmatprep.subr.bf16.mxu0 0
    %97 = vmatpush1.bf16.msra.mxu0 0
    %98 = vmatprep.subr.bf16.mxu0 0
    %99 = vmatpush1.bf16.msra.mxu0 0
    %100 = vmatprep.subr.bf16.mxu0 0
    %101 = vmatpush1.bf16.msra.mxu0 0
    %102 = vmatprep.subr.bf16.mxu0 0
    %103 = vmatpush1.bf16.msra.mxu0 0
    %104 = vmatprep.subr.bf16.mxu0 0
    %105 = vmatpush1.bf16.msra.mxu0 0
    %106 = vmatprep.subr.bf16.mxu0 0
    %107 = vmatpush1.bf16.msra.mxu0 0
    %108 = vmatprep.subr.bf16.mxu0 0
    %109 = vmatpush1.bf16.msra.mxu0 0
    %110 = vmatprep.subr.bf16.mxu0 0
    %111 = vmatpush1.bf16.msra.mxu0 0
    %112 = vmatprep.subr.bf16.mxu0 0
    %113 = vmatpush1.bf16.msra.mxu0 0
    %114 = vmatprep.subr.bf16.mxu0 0
    %115 = vmatpush1.bf16.msra.mxu0 0
    %116 = vmatprep.mubr.bf16.mxu0 0
    %117 = vmatmul.mubr.bf16.gmra.mrb[0].mxu0 %v82
    %v118 = vpop.f32.mrb[0].mxu0
    %v119 = vadd.f32 %v66, %v118
    %v120 = vpop.f32.mrb[0].mxu0
    %v121 = vpop.f32.mrb[0].mxu0
    %v122 = vpop.f32.mrb[0].mxu0
    %123 = vdwg.mxu0
    %v124 = vmul.f32 %v119, 0.1
    %v125 = vmax.f32 %v119, %v124
    %v126 = vpack.c.bf16 %v125, %v125
    %v127 = vld [vmem:[#allocation5] sm:$0xf]
    %v128 = vld [vmem:[#allocation5 + $0x4] sm:$0xf]
    %v129 = vld [vmem:[#allocation5 + $0x8] sm:$0xf]
    %v130 = vld [vmem:[#allocation5 + $0xc] sm:$0xf]
    %v131 = vld [vmem:[%s4] sm:$0x1]
    %v133 = vlaneseq
    %v134 = vshrl.u32 %v133, 7
    %v135 = vsub.s32 0, %v134
    %v136 = vrot.slane %v131, %v135
    %v142 = vunpack.c.l.b16 %v127
    %v143 = vunpack.c.l.b16 %v128
    %v144 = vunpack.c.l.b16 %v129
    %v145 = vunpack.c.l.b16 %v130
    %v146 = vpack.c.b16 %v143, %v142
    %v147 = vpack.c.b16 %v145, %v144
    %v151 = vsel %vm80, %v126, 0
    %153 = vmatprep.subr.bf16.mxu0 0
    %154 = vmatpush1.bf16.msra.mxu0 %v146
    %155 = vmatprep.subr.bf16.mxu0 0
    %156 = vmatpush1.bf16.msra.mxu0 %v147
    %157 = vmatprep.subr.bf16.mxu0 0
    %158 = vmatpush1.bf16.msra.mxu0 0
    %159 = vmatprep.subr.bf16.mxu0 0
    %160 = vmatpush1.bf16.msra.mxu0 0
    %161 = vmatprep.subr.bf16.mxu0 0
    %162 = vmatpush1.bf16.msra.mxu0 0
    %163 = vmatprep.subr.bf16.mxu0 0
    %164 = vmatpush1.bf16.msra.mxu0 0
    %165 = vmatprep.subr.bf16.mxu0 0
    %166 = vmatpush1.bf16.msra.mxu0 0
    %167 = vmatprep.subr.bf16.mxu0 0
    %168 = vmatpush1.bf16.msra.mxu0 0
    %169 = vmatprep.subr.bf16.mxu0 0
    %170 = vmatpush1.bf16.msra.mxu0 0
    %171 = vmatprep.subr.bf16.mxu0 0
    %172 = vmatpush1.bf16.msra.mxu0 0
    %173 = vmatprep.subr.bf16.mxu0 0
    %174 = vmatpush1.bf16.msra.mxu0 0
    %175 = vmatprep.subr.bf16.mxu0 0
    %176 = vmatpush1.bf16.msra.mxu0 0
    %177 = vmatprep.subr.bf16.mxu0 0
    %178 = vmatpush1.bf16.msra.mxu0 0
    %179 = vmatprep.subr.bf16.mxu0 0
    %180 = vmatpush1.bf16.msra.mxu0 0
    %181 = vmatprep.subr.bf16.mxu0 0
    %182 = vmatpush1.bf16.msra.mxu0 0
    %183 = vmatprep.subr.bf16.mxu0 0
    %184 = vmatpush1.bf16.msra.mxu0 0
    %185 = vmatprep.mubr.bf16.mxu0 0
    %186 = vmatmul.mubr.bf16.gmra.mrb[0].mxu0 %v151
    %v187 = vpop.f32.mrb[0].mxu0
    %v188 = vadd.f32 %v136, %v187
    %v189 = vpop.f32.mrb[0].mxu0
    %v190 = vpop.f32.mrb[0].mxu0
    %v191 = vpop.f32.mrb[0].mxu0
    %192 = vdwg.mxu0
    %v193 = vmul.f32 %v188, 0.1
    %v194 = vmax.f32 %v188, %v193
    %v195 = vpack.c.bf16 %v194, %v194
    %s196 = scalar_lea.vmem [#allocation5], 16
    %v197 = vld [vmem:[%s196] sm:$0xf]
    %v198 = vld [vmem:[%s196 + $0x4] sm:$0xf]
    %v199 = vld [vmem:[%s196 + $0x8] sm:$0xf]
    %v200 = vld [vmem:[%s196 + $0xc] sm:$0xf]
    %s201 = scalar_lea.vmem %s4, 1
    %v202 = vld [vmem:[%s201] sm:$0x1]
    %v204 = vlaneseq
    %v205 = vshrl.u32 %v204, 7
    %v206 = vsub.s32 0, %v205
    %v207 = vrot.slane %v202, %v206
    %v213 = vunpack.c.l.b16 %v197
    %v214 = vunpack.c.l.b16 %v198
    %v215 = vunpack.c.l.b16 %v199
    %v216 = vunpack.c.l.b16 %v200
    %v217 = vpack.c.b16 %v214, %v213
    %v218 = vpack.c.b16 %v216, %v215
    %v222 = vsel %vm80, %v195, 0
    %224 = vmatprep.subr.bf16.mxu0 0
    %225 = vmatpush1.bf16.msra.mxu0 %v217
    %226 = vmatprep.subr.bf16.mxu0 0
    %227 = vmatpush1.bf16.msra.mxu0 %v218
    %228 = vmatprep.subr.bf16.mxu0 0
    %229 = vmatpush1.bf16.msra.mxu0 0
    %230 = vmatprep.subr.bf16.mxu0 0
    %231 = vmatpush1.bf16.msra.mxu0 0
    %232 = vmatprep.subr.bf16.mxu0 0
    %233 = vmatpush1.bf16.msra.mxu0 0
    %234 = vmatprep.subr.bf16.mxu0 0
    %235 = vmatpush1.bf16.msra.mxu0 0
    %236 = vmatprep.subr.bf16.mxu0 0
    %237 = vmatpush1.bf16.msra.mxu0 0
    %238 = vmatprep.subr.bf16.mxu0 0
    %239 = vmatpush1.bf16.msra.mxu0 0
    %240 = vmatprep.subr.bf16.mxu0 0
    %241 = vmatpush1.bf16.msra.mxu0 0
    %242 = vmatprep.subr.bf16.mxu0 0
    %243 = vmatpush1.bf16.msra.mxu0 0
    %244 = vmatprep.subr.bf16.mxu0 0
    %245 = vmatpush1.bf16.msra.mxu0 0
    %246 = vmatprep.subr.bf16.mxu0 0
    %247 = vmatpush1.bf16.msra.mxu0 0
    %248 = vmatprep.subr.bf16.mxu0 0
    %249 = vmatpush1.bf16.msra.mxu0 0
    %250 = vmatprep.subr.bf16.mxu0 0
    %251 = vmatpush1.bf16.msra.mxu0 0
    %252 = vmatprep.subr.bf16.mxu0 0
    %253 = vmatpush1.bf16.msra.mxu0 0
    %254 = vmatprep.subr.bf16.mxu0 0
    %255 = vmatpush1.bf16.msra.mxu0 0
    %256 = vmatprep.mubr.bf16.mxu0 0
    %257 = vmatmul.mubr.bf16.gmra.mrb[0].mxu0 %v222
    %v258 = vpop.f32.mrb[0].mxu0
    %v259 = vadd.f32 %v207, %v258
    %v260 = vpop.f32.mrb[0].mxu0
    %v261 = vpop.f32.mrb[0].mxu0
    %v262 = vpop.f32.mrb[0].mxu0
    %263 = vdwg.mxu0
    %v264 = vmul.f32 %v259, 0.1
    %v265 = vmax.f32 %v259, %v264
    %v266 = vpack.c.bf16 %v265, %v265
    %s267 = scalar_lea.vmem [#allocation5], 32
    %v268 = vld [vmem:[%s267] sm:$0xf]
    %v269 = vld [vmem:[%s267 + $0x4] sm:$0xf]
    %v270 = vld [vmem:[%s267 + $0x8] sm:$0xf]
    %v271 = vld [vmem:[%s267 + $0xc] sm:$0xf]
    %s272 = scalar_lea.vmem %s4, 2
    %v273 = vld [vmem:[%s272] sm:$0x1]
    %v275 = vlaneseq
    %v276 = vshrl.u32 %v275, 7
    %v277 = vsub.s32 0, %v276
    %v278 = vrot.slane %v273, %v277
    %v284 = vunpack.c.l.b16 %v268
    %v285 = vunpack.c.l.b16 %v269
    %v286 = vunpack.c.l.b16 %v270
    %v287 = vunpack.c.l.b16 %v271
    %v288 = vpack.c.b16 %v285, %v284
    %v289 = vpack.c.b16 %v287, %v286
    %v293 = vsel %vm80, %v266, 0
    %295 = vmatprep.subr.bf16.mxu0 0
    %296 = vmatpush1.bf16.msra.mxu0 %v288
    %297 = vmatprep.subr.bf16.mxu0 0
    %298 = vmatpush1.bf16.msra.mxu0 %v289
    %299 = vmatprep.subr.bf16.mxu0 0
    %300 = vmatpush1.bf16.msra.mxu0 0
    %301 = vmatprep.subr.bf16.mxu0 0
    %302 = vmatpush1.bf16.msra.mxu0 0
    %303 = vmatprep.subr.bf16.mxu0 0
    %304 = vmatpush1.bf16.msra.mxu0 0
    %305 = vmatprep.subr.bf16.mxu0 0
    %306 = vmatpush1.bf16.msra.mxu0 0
    %307 = vmatprep.subr.bf16.mxu0 0
    %308 = vmatpush1.bf16.msra.mxu0 0
    %309 = vmatprep.subr.bf16.mxu0 0
    %310 = vmatpush1.bf16.msra.mxu0 0
    %311 = vmatprep.subr.bf16.mxu0 0
    %312 = vmatpush1.bf16.msra.mxu0 0
    %313 = vmatprep.subr.bf16.mxu0 0
    %314 = vmatpush1.bf16.msra.mxu0 0
    %315 = vmatprep.subr.bf16.mxu0 0
    %316 = vmatpush1.bf16.msra.mxu0 0
    %317 = vmatprep.subr.bf16.mxu0 0
    %318 = vmatpush1.bf16.msra.mxu0 0
    %319 = vmatprep.subr.bf16.mxu0 0
    %320 = vmatpush1.bf16.msra.mxu0 0
    %321 = vmatprep.subr.bf16.mxu0 0
    %322 = vmatpush1.bf16.msra.mxu0 0
    %323 = vmatprep.subr.bf16.mxu0 0
    %324 = vmatpush1.bf16.msra.mxu0 0
    %325 = vmatprep.subr.bf16.mxu0 0
    %326 = vmatpush1.bf16.msra.mxu0 0
    %327 = vmatprep.mubr.bf16.mxu0 0
    %328 = vmatmul.mubr.bf16.gmra.mrb[0].mxu0 %v293
    %v329 = vpop.f32.mrb[0].mxu0
    %v330 = vadd.f32 %v278, %v329
    %v331 = vpop.f32.mrb[0].mxu0
    %v332 = vpop.f32.mrb[0].mxu0
    %v333 = vpop.f32.mrb[0].mxu0
    %334 = vdwg.mxu0
    %v335 = vmul.f32 %v330, 0.1
    %v336 = vmax.f32 %v330, %v335
    %v337 = vpack.c.bf16 %v336, %v336
    %s338 = scalar_lea.vmem [#allocation5], 48
    %v339 = vld [vmem:[%s338] sm:$0xf]
    %v340 = vld [vmem:[%s338 + $0x4] sm:$0xf]
    %v341 = vld [vmem:[%s338 + $0x8] sm:$0xf]
    %v342 = vld [vmem:[%s338 + $0xc] sm:$0xf]
    %s343 = scalar_lea.vmem %s4, 3
    %v344 = vld [vmem:[%s343] sm:$0x1]
    %v346 = vlaneseq
    %v347 = vshrl.u32 %v346, 7
    %v348 = vsub.s32 0, %v347
    %v349 = vrot.slane %v344, %v348
    %v355 = vunpack.c.l.b16 %v339
    %v356 = vunpack.c.l.b16 %v340
    %v357 = vunpack.c.l.b16 %v341
    %v358 = vunpack.c.l.b16 %v342
    %v359 = vpack.c.b16 %v356, %v355
    %v360 = vpack.c.b16 %v358, %v357
    %v364 = vsel %vm80, %v337, 0
    %366 = vmatprep.subr.bf16.mxu0 0
    %367 = vmatpush1.bf16.msra.mxu0 %v359
    %368 = vmatprep.subr.bf16.mxu0 0
    %369 = vmatpush1.bf16.msra.mxu0 %v360
    %370 = vmatprep.subr.bf16.mxu0 0
    %371 = vmatpush1.bf16.msra.mxu0 0
    %372 = vmatprep.subr.bf16.mxu0 0
    %373 = vmatpush1.bf16.msra.mxu0 0
    %374 = vmatprep.subr.bf16.mxu0 0
    %375 = vmatpush1.bf16.msra.mxu0 0
    %376 = vmatprep.subr.bf16.mxu0 0
    %377 = vmatpush1.bf16.msra.mxu0 0
    %378 = vmatprep.subr.bf16.mxu0 0
    %379 = vmatpush1.bf16.msra.mxu0 0
    %380 = vmatprep.subr.bf16.mxu0 0
    %381 = vmatpush1.bf16.msra.mxu0 0
    %382 = vmatprep.subr.bf16.mxu0 0
    %383 = vmatpush1.bf16.msra.mxu0 0
    %384 = vmatprep.subr.bf16.mxu0 0
    %385 = vmatpush1.bf16.msra.mxu0 0
    %386 = vmatprep.subr.bf16.mxu0 0
    %387 = vmatpush1.bf16.msra.mxu0 0
    %388 = vmatprep.subr.bf16.mxu0 0
    %389 = vmatpush1.bf16.msra.mxu0 0
    %390 = vmatprep.subr.bf16.mxu0 0
    %391 = vmatpush1.bf16.msra.mxu0 0
    %392 = vmatprep.subr.bf16.mxu0 0
    %393 = vmatpush1.bf16.msra.mxu0 0
    %394 = vmatprep.subr.bf16.mxu0 0
    %395 = vmatpush1.bf16.msra.mxu0 0
    %396 = vmatprep.subr.bf16.mxu0 0
    %397 = vmatpush1.bf16.msra.mxu0 0
    %398 = vmatprep.mubr.bf16.mxu0 0
    %399 = vmatmul.mubr.bf16.gmra.mrb[0].mxu0 %v364
    %v400 = vpop.f32.mrb[0].mxu0
    %v401 = vadd.f32 %v349, %v400
    %v402 = vpop.f32.mrb[0].mxu0
    %v403 = vpop.f32.mrb[0].mxu0
    %v404 = vpop.f32.mrb[0].mxu0
    %405 = vdwg.mxu0
    %v406 = vmul.f32 %v401, 0.1
    %v407 = vmax.f32 %v401, %v406
    %v408 = vld [vmem:[%s5] sm:$0x1]
    %v409 = vunpack.c.l.bf16 %v408
    %v410 = vlaneseq
    %v411 = vshrl.u32 %v410, 7
    %v412 = vsub.s32 0, %v411
    %v413 = vrot.slane %v409, %v412
    %v414 = vmul.f32 %v407, %v413
    %vm415 = vcmask 254976
    %v416 = vsel %vm415, %v414, 0.0
    %417 = vadd.xlane.f32.xlu0 %v416
    %v418 = vpop.xlane.xlu0 %417
    %s419 = sld [smem:[#allocation2]]
    %v420 = vstv %s419
    %v421 = vadd.f32 %v418, %v420
    %vm422 = vcmask 1024
    %423 = vst.msk [vmem:[%s7] sm:$0x3] %vm422, %v421
    // Predicated region
    $region38: #{tpu_custom_call.1} parent=1 // pred_check
      _
    $region39: #{tpu_custom_call.1} parent=1 // pred_check_branch
      %425 = sbr.rel (0) target = $region41
    $region40: #{tpu_custom_call.1} parent=1 // pred_region
      _
    $region41: #{tpu_custom_call.1} parent=1 // pred_fallthru
      _
    // Predicated region
    $region42: #{tpu_custom_call.1} parent=1 // pred_check
      _
    $region43: #{tpu_custom_call.1} parent=1 // pred_check_branch
      %427 = sbr.rel (0) target = $region45
    $region44: #{tpu_custom_call.1} parent=1 // pred_region
      _
    $region45: #{tpu_custom_call.1} parent=1 // pred_fallthru
      _
    %428 = vsyncpa [#allocation4], 1
    %429 = vsyncpa [#allocation6], 1

</llo_original>
